<compile_context>
chip_gen: v5e
topology: v5e:2x2
jax: 0.10.0
libtpu: 0.0.40
codegen_flags: <defaults>
</compile_context>

<pallas_src>
import functools

import jax
import jax.numpy as jnp
from jax.experimental import pallas as pl
from jax.experimental.pallas import tpu as pltpu

_LANE = 128
_SUBLANE = 8


def _round_up(x, m):
    return (x + m - 1) // m * m


def _hw_info():
    """Return (vmem_capacity_bytes, is_v5e, multi_tensorcore_chip), robustly."""
    kind = ""
    try:
        kind = jax.devices()[0].device_kind.lower()
    except Exception:
        pass
    vmem = None
    try:
        vmem = int(pltpu.get_tpu_info().vmem_capacity_bytes)
    except Exception:
        vmem = None
    if vmem is None:
        vmem = (64 if "v7" in kind else 128) * 1024 * 1024
    is_v5e = any(t in kind for t in ("v5e", "v5 lite", "v5lite"))
    multi_tc = any(t in kind for t in ("v4", "v5p", "v7"))
    return vmem, is_v5e, multi_tc


def _attn_kernel(q_ref, k_ref, v_ref, mask_ref, ctx_ref, prob_ref,
                 kbf_ref, vbf_ref, *, inv_scale, approx_recip):
    # Blocks: q (G, TQ, D) f32, k/v (G, Sk, D) f32 (resident across the query
    # axis), mask (G, TQ, Sk) int8; outputs ctx (G, TQ, D), prob (G, TQ, Sk).
    # Cast K/V to bf16 once per head-group (query-tile index 0) into scratch:
    # the f32->bf16 VPU pass is not repeated for every query tile.
    @pl.when(pl.program_id(1) == 0)
    def _():
        kbf_ref[...] = k_ref[...].astype(jnp.bfloat16)
        vbf_ref[...] = v_ref[...].astype(jnp.bfloat16)

    # Fold 1/scale into Q (TQ*D mults instead of TQ*Sk); bf16 MXU operands.
    q = (q_ref[...] * inv_scale).astype(jnp.bfloat16)
    m = mask_ref[...]

    # scores = (Q / scale) @ K^T : contract D directly (no XLU transpose),
    # f32 accumulation on the MXU.
    scores = jnp.einsum("gqd,gkd->gqk", q, kbf_ref[...],
                        preferred_element_type=jnp.float32)
    scores = jnp.where(m != 0, jnp.float32(-1.0e9), scores)

    # Numerically stable softmax along the key axis.
    s_max = jnp.max(scores, axis=-1, keepdims=True)
    e = jnp.exp(scores - s_max)
    denom = jnp.sum(e, axis=-1, keepdims=True)
    if approx_recip:
        prob = e * pl.reciprocal(denom, approx=True)   # EUP slot, ~free
    else:
        prob = e / denom                               # exact PyTorch parity

    # context = P @ V with bf16 MXU inputs, f32 accumulation.
    ctx = jnp.einsum("gqk,gkd->gqd", prob.astype(jnp.bfloat16), vbf_ref[...],
                     preferred_element_type=jnp.float32)

    ctx_ref[...] = ctx.astype(ctx_ref.dtype)
    prob_ref[...] = prob.astype(prob_ref.dtype)


def _choose_tq(Sq, cap):
    cap = max(_SUBLANE, (cap // _SUBLANE) * _SUBLANE)
    if Sq <= cap:
        return _round_up(Sq, _SUBLANE)
    # Prefer a tile that divides Sq exactly: padding q/mask costs a full extra
    # HBM read+write pass outside the kernel.
    for cand in range(cap, cap // 2 - 1, -_SUBLANE):
        if Sq % cand == 0:
            return cand
    return cap


def _pick_group_size(BH, TQ, Sk, D, budget_bytes, prob_bytes, cap_to_half):
    """Heads per grid step: double-buffered tiles + bf16 scratch + live f32
    temporaries must fit in the generation-specific VMEM budget."""
    per_head = (
        2 * TQ * D * 4              # q input blocks (double buffered, f32)
        + 2 * 2 * Sk * D * 4        # k and v input blocks (double buffered, f32)
        + 2 * Sk * D * 2            # k and v bf16 scratch (single copy)
        + 2 * TQ * Sk * 1           # int8 mask blocks
        + 2 * TQ * D * 4            # ctx output blocks
        + 2 * TQ * Sk * prob_bytes  # prob output blocks
        + 4 * TQ * Sk * 4           # f32 scores / exp / prob / where temporaries
        + 2 * TQ * Sk * 2           # bf16 prob copy fed to the MXU
    )
    g = max(1, min(BH, budget_bytes // max(per_head, 1)))
    if cap_to_half and BH >= 2:
        # Multi-TensorCore chips only: keep >= 2 grid steps along BH so both
        # cores get work on the "parallel" axis.
        g = min(g, max(1, BH // 2))
    while BH % g:
        g -= 1
    return g


def scaled_dot_product_attention(Q, K, V, attn_mask, head_dim, *,
                                 q_tile=None, group_size=None,
                                 prob_dtype=jnp.float32, approx_recip=True):
    """Q, K, V: (B, H, Sq/Sk, D) float32; attn_mask: (B, H, Sq, Sk) bool or
    integer (nonzero = masked).  Returns (context (B,H,Sq,D) f32,
    attn_prob (B,H,Sq,Sk) prob_dtype), matching the PyTorch module with its
    default dropout p=0."""
    B, H, Sq, D = Q.shape
    Sk = K.shape[2]
    BH = B * H
    inv_scale = 1.0 / (float(head_dim) ** 0.5)

    vmem_bytes, is_v5e, multi_tc = _hw_info()
    vmem_limit = int(vmem_bytes * 0.7)     # explicit scoped-VMEM ceiling
    tile_budget = int(vmem_limit * 0.8)    # headroom for compiler temporaries
    prob_bytes = jnp.dtype(prob_dtype).itemsize

    # ---- tiling choices ----
    # v5e's MXU is 128x128 -> TQ=128 already fills the output rows; keep
    # TQ>=256 on v6e/v7x (256x256 MXU) and trade G, not TQ, when VMEM-bound.
    tq_cap = 128 if is_v5e else 256
    if q_tile is None:
        TQ = _choose_tq(Sq, tq_cap)
    else:
        TQ = min(_round_up(int(q_tile), _SUBLANE), _round_up(Sq, _SUBLANE))
    Sq_p = _round_up(Sq, TQ)
    # Lane-dense prob/mask tiles: pad Sk to a multiple of 128 only when Sk is
    # already >= 128 (padding a tiny Sk would just inflate HBM traffic).
    Sk_p = _round_up(Sk, _LANE) if Sk >= _LANE else Sk

    if group_size is None:
        G = _pick_group_size(BH, TQ, Sk_p, D, tile_budget, prob_bytes, multi_tc)
    else:
        G = max(1, min(int(group_size), BH))
        while BH % G:
            G -= 1

    # ---- flatten heads & (only when unavoidable) pad ----
    q = Q.reshape(BH, Sq, D)
    k = K.reshape(BH, Sk, D)
    v = V.reshape(BH, Sk, D)
    mask = attn_mask.reshape(BH, Sq, Sk)
    if mask.dtype != jnp.int8:
        # TODO(synk): callers holding an int8/uint8 mask should pass it
        # directly; this cast is one extra HBM read+write pass over the mask.
        mask = mask.astype(jnp.int8)

    if Sq_p != Sq:
        q = jnp.pad(q, ((0, 0), (0, Sq_p - Sq), (0, 0)))
    if Sk_p != Sk:
        k = jnp.pad(k, ((0, 0), (0, Sk_p - Sk), (0, 0)))
        v = jnp.pad(v, ((0, 0), (0, Sk_p - Sk), (0, 0)))
    if Sq_p != Sq or Sk_p != Sk:
        mask = jnp.pad(mask, ((0, 0), (0, Sq_p - Sq), (0, Sk_p - Sk)),
                       constant_values=jnp.int8(1))  # padded keys fully masked

    kernel = functools.partial(_attn_kernel, inv_scale=inv_scale,
                               approx_recip=approx_recip)

    # Grid: (head-group, query-tile).  K/V index_maps ignore the query-tile
    # axis, which is marked "arbitrary" (strictly sequential per core), so the
    # K/V blocks and their bf16 scratch stay VMEM-resident across it.
    # TODO(synk): for very long Sk on v7x (64 MiB VMEM) add a key-axis grid
    # dimension with an online-softmax rescale pass instead of holding the
    # full-length K/V resident.
    grid = (BH // G, Sq_p // TQ)

    ctx, prob = pl.pallas_call(
        kernel,
        out_shape=(
            jax.ShapeDtypeStruct((BH, Sq_p, D), jnp.float32),
            jax.ShapeDtypeStruct((BH, Sq_p, Sk_p), prob_dtype),
        ),
        grid_spec=pltpu.PrefetchScalarGridSpec(
            num_scalar_prefetch=0,
            grid=grid,
            in_specs=[
                pl.BlockSpec((G, TQ, D), lambda i, j: (i, j, 0)),      # q
                pl.BlockSpec((G, Sk_p, D), lambda i, j: (i, 0, 0)),    # k (resident over j)
                pl.BlockSpec((G, Sk_p, D), lambda i, j: (i, 0, 0)),    # v (resident over j)
                pl.BlockSpec((G, TQ, Sk_p), lambda i, j: (i, j, 0)),   # mask (int8)
            ],
            out_specs=[
                pl.BlockSpec((G, TQ, D), lambda i, j: (i, j, 0)),      # context
                pl.BlockSpec((G, TQ, Sk_p), lambda i, j: (i, j, 0)),   # attn_prob
            ],
            scratch_shapes=[
                pltpu.VMEM((G, Sk_p, D), jnp.bfloat16),   # K, cast once per head-group
                pltpu.VMEM((G, Sk_p, D), jnp.bfloat16),   # V, cast once per head-group
            ],
        ),
        compiler_params=pltpu.CompilerParams(
            dimension_semantics=("parallel", "arbitrary"),
            vmem_limit_bytes=vmem_limit,
        ),
    )(q, k, v, mask)

    ctx = ctx[:, :Sq, :].reshape(B, H, Sq, D)
    prob = prob[:, :Sq, :Sk].reshape(B, H, Sq, Sk)
    return ctx, prob


def _reference(Q, K, V, attn_mask, head_dim):
    scale = float(head_dim) ** 0.5
    scores = jnp.einsum("bhqd,bhkd->bhqk", Q, K) / scale
    scores = jnp.where(attn_mask, -1.0e9, scores)
    prob = jax.nn.softmax(scores, axis=-1)
    ctx = jnp.einsum("bhqk,bhkd->bhqd", prob, V)
    return ctx, prob


if __name__ == "__main__":
    B, H, Sq, Sk, D = 2, 4, 8, 8, 32
    key = jax.random.PRNGKey(0)
    kq, kk, kv, km = jax.random.split(key, 4)
    Q = jax.random.normal(kq, (B, H, Sq, D), dtype=jnp.float32)
    K = jax.random.normal(kk, (B, H, Sk, D), dtype=jnp.float32)
    V = jax.random.normal(kv, (B, H, Sk, D), dtype=jnp.float32)
    # Boolean attention mask (True = masked out); keep >= 1 valid key per query.
    attn_mask = jax.random.bernoulli(km, p=0.3, shape=(B, H, Sq, Sk))
    attn_mask = attn_mask.at[..., 0].set(False)

    ctx, prob = scaled_dot_product_attention(Q, K, V, attn_mask, head_dim=D)
    jax.block_until_ready((ctx, prob))

    ctx_ref, prob_ref = _reference(Q, K, V, attn_mask, D)
    # bf16 MXU inputs + approx reciprocal => compare at bf16-level tolerance.
    assert jnp.allclose(ctx, ctx_ref, atol=2e-2, rtol=2e-2), (
        "ctx max abs err", float(jnp.max(jnp.abs(ctx - ctx_ref))))
    assert jnp.allclose(prob, prob_ref, atol=2e-2, rtol=2e-2), (
        "prob max abs err", float(jnp.max(jnp.abs(prob - prob_ref))))

    print("KERNEL_OK")
</pallas_src>

<mosaic_0001>
module attributes {stable_mosaic.version = 11 : i64} {
  func.func @_attn_kernel(%arg0: i32, %arg1: i32, %arg2: memref<8x8x32xf32, #tpu.memory_space<vmem>>, %arg3: memref<8x8x32xf32, #tpu.memory_space<vmem>>, %arg4: memref<8x8x32xf32, #tpu.memory_space<vmem>>, %arg5: memref<8x8x8xi8, #tpu.memory_space<vmem>>, %arg6: memref<8x8x32xf32, #tpu.memory_space<vmem>>, %arg7: memref<8x8x8xf32, #tpu.memory_space<vmem>>, %arg8: memref<8x8x32xbf16, #tpu.memory_space<vmem>>, %arg9: memref<8x8x32xbf16, #tpu.memory_space<vmem>>) attributes {dimension_semantics = [#tpu.dimension_semantics<parallel>, #tpu.dimension_semantics<arbitrary>], iteration_bounds = array<i64: 1, 1>, scalar_prefetch = 0 : i64, scratch_operands = 2 : i64, tpu.core_type = #tpu.core_type<tc>, window_params = [{transform_indices = @transform_0, window_bounds = array<i64: 8, 8, 32>}, {transform_indices = @transform_1, window_bounds = array<i64: 8, 8, 32>}, {transform_indices = @transform_2, window_bounds = array<i64: 8, 8, 32>}, {transform_indices = @transform_3, window_bounds = array<i64: 8, 8, 8>}, {transform_indices = @transform_4, window_bounds = array<i64: 8, 8, 32>}, {transform_indices = @transform_5, window_bounds = array<i64: 8, 8, 8>}]} {
    %c0_i32 = arith.constant 0 : i32
    %0 = arith.cmpi eq, %arg1, %c0_i32 : i32
    %1 = arith.extui %0 : i1 to i32
    %c0_i32_0 = arith.constant 0 : i32
    %2 = arith.cmpi ne, %1, %c0_i32_0 : i32
    scf.if %2 {
      %c0_23 = arith.constant 0 : index
      %c0_24 = arith.constant 0 : index
      %c0_25 = arith.constant 0 : index
      %29 = vector.load %arg3[%c0_23, %c0_24, %c0_25] : memref<8x8x32xf32, #tpu.memory_space<vmem>>, vector<8x8x32xf32>
      %30 = arith.truncf %29 : vector<8x8x32xf32> to vector<8x8x32xbf16>
      %c0_26 = arith.constant 0 : index
      %c0_27 = arith.constant 0 : index
      %c0_28 = arith.constant 0 : index
      %31 = vector.load %arg8[%c0_26, %c0_27, %c0_28] : memref<8x8x32xbf16, #tpu.memory_space<vmem>>, vector<8x8x32xbf16>
      tpu.vector_store %arg8[%c0_26, %c0_27, %c0_28], %30 {strides = array<i32>} : memref<8x8x32xbf16, #tpu.memory_space<vmem>>, vector<8x8x32xbf16>,
      %c0_29 = arith.constant 0 : index
      %c0_30 = arith.constant 0 : index
      %c0_31 = arith.constant 0 : index
      %32 = vector.load %arg4[%c0_29, %c0_30, %c0_31] : memref<8x8x32xf32, #tpu.memory_space<vmem>>, vector<8x8x32xf32>
      %33 = arith.truncf %32 : vector<8x8x32xf32> to vector<8x8x32xbf16>
      %c0_32 = arith.constant 0 : index
      %c0_33 = arith.constant 0 : index
      %c0_34 = arith.constant 0 : index
      %34 = vector.load %arg9[%c0_32, %c0_33, %c0_34] : memref<8x8x32xbf16, #tpu.memory_space<vmem>>, vector<8x8x32xbf16>
      tpu.vector_store %arg9[%c0_32, %c0_33, %c0_34], %33 {strides = array<i32>} : memref<8x8x32xbf16, #tpu.memory_space<vmem>>, vector<8x8x32xbf16>,
    } else {
    }
    %c0 = arith.constant 0 : index
    %c0_1 = arith.constant 0 : index
    %c0_2 = arith.constant 0 : index
    %3 = vector.load %arg2[%c0, %c0_1, %c0_2] : memref<8x8x32xf32, #tpu.memory_space<vmem>>, vector<8x8x32xf32>
    %cst = arith.constant 0.176776692 : f32
    %4 = vector.broadcast %cst : f32 to vector<8x8x32xf32>
    %5 = arith.mulf %3, %4 : vector<8x8x32xf32>
    %6 = arith.truncf %5 : vector<8x8x32xf32> to vector<8x8x32xbf16>
    %c0_3 = arith.constant 0 : index
    %c0_4 = arith.constant 0 : index
    %c0_5 = arith.constant 0 : index
    %7 = vector.load %arg5[%c0_3, %c0_4, %c0_5] : memref<8x8x8xi8, #tpu.memory_space<vmem>>, vector<8x8x8xi8>
    %c0_6 = arith.constant 0 : index
    %c0_7 = arith.constant 0 : index
    %c0_8 = arith.constant 0 : index
    %8 = vector.load %arg8[%c0_6, %c0_7, %c0_8] : memref<8x8x32xbf16, #tpu.memory_space<vmem>>, vector<8x8x32xbf16>
    "tpu.trace_start"() <{level = 10 : i32, message = "gqd,gkd->gqk"}> : () -> ()
    %cst_9 = arith.constant dense<0.000000e+00> : vector<8x8x8xf32>
    %9 = tpu.matmul %6, %8, %cst_9 {dimension_numbers = #tpu.dot_dimension_numbers<[2], [2], [1], [1], [0, 0, 0, 1, 1, 1], [0], [0]>} : vector<8x8x32xbf16>, vector<8x8x32xbf16>, vector<8x8x8xf32> -> vector<8x8x8xf32>
    %c0_i8 = arith.constant 0 : i8
    "tpu.trace_stop"() : () -> ()
    %10 = vector.broadcast %c0_i8 : i8 to vector<8x8x8xi8>
    %11 = arith.cmpi ne, %7, %10 : vector<8x8x8xi8>
    %cst_10 = arith.constant -1.000000e+09 : f32
    %12 = vector.broadcast %cst_10 : f32 to vector<8x8x8xf32>
    %13 = arith.select %11, %12, %9 : vector<8x8x8xi1>, vector<8x8x8xf32>
    %cst_11 = arith.constant dense<0xFF800000> : vector<8x8xf32>
    %14 = vector.multi_reduction <maximumf>, %13, %cst_11 [2] : vector<8x8x8xf32> to vector<8x8xf32>
    %15 = vector.shape_cast %14 : vector<8x8xf32> to vector<8x8x1xf32>
    %16 = vector.broadcast %15 : vector<8x8x1xf32> to vector<8x8x8xf32>
    %17 = arith.subf %13, %16 : vector<8x8x8xf32>
    %18 = math.exp %17 : vector<8x8x8xf32>
    %cst_12 = arith.constant dense<0.000000e+00> : vector<8x8xf32>
    %19 = vector.multi_reduction <add>, %18, %cst_12 [2] : vector<8x8x8xf32> to vector<8x8xf32>
    %20 = vector.shape_cast %19 : vector<8x8xf32> to vector<8x8x1xf32>
    %21 = tpu.reciprocal %20 {approx = true} : vector<8x8x1xf32> -> vector<8x8x1xf32>
    %22 = vector.broadcast %21 : vector<8x8x1xf32> to vector<8x8x8xf32>
    %23 = arith.mulf %18, %22 : vector<8x8x8xf32>
    %24 = arith.truncf %23 : vector<8x8x8xf32> to vector<8x8x8xbf16>
    %c0_13 = arith.constant 0 : index
    %c0_14 = arith.constant 0 : index
    %c0_15 = arith.constant 0 : index
    %25 = vector.load %arg9[%c0_13, %c0_14, %c0_15] : memref<8x8x32xbf16, #tpu.memory_space<vmem>>, vector<8x8x32xbf16>
    "tpu.trace_start"() <{level = 10 : i32, message = "gqk,gkd->gqd"}> : () -> ()
    %cst_16 = arith.constant dense<0.000000e+00> : vector<8x8x32xf32>
    %26 = tpu.matmul %24, %25, %cst_16 {dimension_numbers = #tpu.dot_dimension_numbers<[2], [1], [1], [2], [0, 0, 0, 1, 1, 2], [0], [0]>} : vector<8x8x8xbf16>, vector<8x8x32xbf16>, vector<8x8x32xf32> -> vector<8x8x32xf32>
    "tpu.trace_stop"() : () -> ()
    %c0_17 = arith.constant 0 : index
    %c0_18 = arith.constant 0 : index
    %c0_19 = arith.constant 0 : index
    %27 = vector.load %arg6[%c0_17, %c0_18, %c0_19] : memref<8x8x32xf32, #tpu.memory_space<vmem>>, vector<8x8x32xf32>
    tpu.vector_store %arg6[%c0_17, %c0_18, %c0_19], %26 {strides = array<i32>} : memref<8x8x32xf32, #tpu.memory_space<vmem>>, vector<8x8x32xf32>,
    %c0_20 = arith.constant 0 : index
    %c0_21 = arith.constant 0 : index
    %c0_22 = arith.constant 0 : index
    %28 = vector.load %arg7[%c0_20, %c0_21, %c0_22] : memref<8x8x8xf32, #tpu.memory_space<vmem>>, vector<8x8x8xf32>
    tpu.vector_store %arg7[%c0_20, %c0_21, %c0_22], %23 {strides = array<i32>} : memref<8x8x8xf32, #tpu.memory_space<vmem>>, vector<8x8x8xf32>,
    return
  }
  func.func @transform_0(%arg0: i32, %arg1: i32) -> (i32, i32, i32) {
    %c0_i32 = arith.constant 0 : i32
    %c0_i32_0 = arith.constant 0 : i32
    return %arg0, %arg1, %c0_i32 : i32, i32, i32
  }
  func.func @transform_1(%arg0: i32, %arg1: i32) -> (i32, i32, i32) {
    %c0_i32 = arith.constant 0 : i32
    %c0_i32_0 = arith.constant 0 : i32
    %c0_i32_1 = arith.constant 0 : i32
    return %arg0, %c0_i32, %c0_i32_0 : i32, i32, i32
  }
  func.func @transform_2(%arg0: i32, %arg1: i32) -> (i32, i32, i32) {
    %c0_i32 = arith.constant 0 : i32
    %c0_i32_0 = arith.constant 0 : i32
    %c0_i32_1 = arith.constant 0 : i32
    return %arg0, %c0_i32, %c0_i32_0 : i32, i32, i32
  }
  func.func @transform_3(%arg0: i32, %arg1: i32) -> (i32, i32, i32) {
    %c0_i32 = arith.constant 0 : i32
    %c0_i32_0 = arith.constant 0 : i32
    return %arg0, %arg1, %c0_i32 : i32, i32, i32
  }
  func.func @transform_4(%arg0: i32, %arg1: i32) -> (i32, i32, i32) {
    %c0_i32 = arith.constant 0 : i32
    %c0_i32_0 = arith.constant 0 : i32
    return %arg0, %arg1, %c0_i32 : i32, i32, i32
  }
  func.func @transform_5(%arg0: i32, %arg1: i32) -> (i32, i32, i32) {
    %c0_i32 = arith.constant 0 : i32
    %c0_i32_0 = arith.constant 0 : i32
    return %arg0, %arg1, %c0_i32 : i32, i32, i32
  }
}

</mosaic_0001>

<llo_original>
// kernel: tpu_custom_call.1
$region0: #{tpu_custom_call.1}
  #allocation0 [shape = 'u32[]', space=smem, size = 0x4, offset = 0x4, fixed_abs, tag = 'smem constant byte address 0x4 - core index']
  #allocation1 [shape = 'u32[72,128]{1,0:T(1,128)}', space=vmem, size = 0x9000, scoped, tag = 'internal scratch']
  #allocation2 [shape = 'bf16[8,8,32]{2,1,0:T(8,128)(2,1)}', space=vmem, size = 0x4000, scoped, tag = 'scratch operand']
  #allocation3 [shape = 'bf16[8,8,32]{2,1,0:T(8,128)(2,1)}', space=vmem, size = 0x4000, scoped, tag = 'scratch operand']
  %s0 = inlined_call_operand.hbm [shape: f32[8,8,32], index: 0, kind: input, shape index: {}]
  %s1 = inlined_call_operand.hbm [shape: f32[8,8,32], index: 1, kind: input, shape index: {}]
  %s2 = inlined_call_operand.hbm [shape: f32[8,8,32], index: 2, kind: input, shape index: {}]
  %s3 = inlined_call_operand.hbm [shape: s8[8,8,8], index: 3, kind: input, shape index: {}]
  %s4 = inlined_call_operand.hbm [shape: f32[8,8,32], index: 4, kind: output, shape index: {0}]
  %s5 = inlined_call_operand.hbm [shape: f32[8,8,8], index: 5, kind: output, shape index: {1}]
  %6 = xla_tuple %s4, %s5
  %s7 = sld [smem:[#allocation0]]
  $region54: #{tpu_custom_call.1} parent=0
    _
  %s9 = ssub.s32 1, %s7
  %s10 = scalar_select 0, %s9, %s7
  $region1: #{tpu_custom_call.1} parent=0
    #allocation4 [shape = 'u8[32768]{0}', space=vmem, size = 0x8000, scoped, tag = 'input window, operand 0, single buffered']
    #allocation5 [shape = 's32[1]{0}', space=sflag, size = 0x4, scoped, tag = 'scoped memory for tpu_custom_call.1']
    #allocation6 [shape = 's32[1]{0}', space=sflag, size = 0x4, scoped, tag = 'scoped memory for tpu_custom_call.1']
    #allocation7 [shape = 'u8[32768]{0}', space=vmem, size = 0x8000, scoped, tag = 'input window, operand 1, single buffered']
    #allocation8 [shape = 's32[1]{0}', space=sflag, size = 0x4, scoped, tag = 'scoped memory for tpu_custom_call.1']
    #allocation9 [shape = 'u8[32768]{0}', space=vmem, size = 0x8000, scoped, tag = 'input window, operand 2, single buffered']
    #allocation10 [shape = 'u8[8192]{0}', space=vmem, size = 0x2000, scoped, tag = 'input window, operand 3, single buffered']
    #allocation11 [shape = 's32[1]{0}', space=sflag, size = 0x4, scoped, tag = 'scoped memory for tpu_custom_call.1']
    #allocation12 [shape = 'u8[32768]{0}', space=vmem, size = 0x8000, scoped, tag = 'output window, operand 0, single buffered']
    #allocation13 [shape = 'u8[32768]{0}', space=vmem, size = 0x8000, scoped, tag = 'output window, operand 1, single buffered']
    #allocation14 [shape = 's32[1]{0}', space=sflag, size = 0x4, scoped, tag = 'scoped memory for tpu_custom_call.1']
    %11 = vsyncpa [#allocation5], 0
    %12 = vsyncpa [#allocation8], 0
    %13 = vsyncpa [#allocation11], 0
    %14 = vsyncpa [#allocation6], 0
    %15 = vsyncpa [#allocation14], 0
    // Predicated region
    $region2: #{tpu_custom_call.1} parent=1 // pred_check
      _
    $region3: #{tpu_custom_call.1} parent=1 // pred_check_branch
      %17 = sbr.rel (0) target = $region5
    $region4: #{tpu_custom_call.1} parent=1 // pred_region
      %19 = vsyncadd [#allocation5], 0
      %s20 = sshll.u32 %s0, 4
      %s21 = int_to_ptr.hbm [resolvable:$true] %s20
      %s22 = sshll.u32 [#allocation4], 4
      %s23 = int_to_ptr.vmem [resolvable:$true] %s22
      %28 = dma.hbm_to_vmem [thread:$0]  %s21, 1024, %s23, [#allocation5], 128, 128, 8
    $region5: #{tpu_custom_call.1} parent=1 // pred_fallthru
      _
    // Predicated region
    $region6: #{tpu_custom_call.1} parent=1 // pred_check
      _
    $region7: #{tpu_custom_call.1} parent=1 // pred_check_branch
      %30 = sbr.rel (0) target = $region9
    $region8: #{tpu_custom_call.1} parent=1 // pred_region
      %32 = vsyncadd [#allocation8], 0
      %s33 = sshll.u32 %s1, 4
      %s34 = int_to_ptr.hbm [resolvable:$true] %s33
      %s35 = sshll.u32 [#allocation7], 4
      %s36 = int_to_ptr.vmem [resolvable:$true] %s35
      %41 = dma.hbm_to_vmem [thread:$0]  %s34, 1024, %s36, [#allocation8], 128, 128, 8
    $region9: #{tpu_custom_call.1} parent=1 // pred_fallthru
      _
    // Predicated region
    $region10: #{tpu_custom_call.1} parent=1 // pred_check
      _
    $region11: #{tpu_custom_call.1} parent=1 // pred_check_branch
      %43 = sbr.rel (0) target = $region13
    $region12: #{tpu_custom_call.1} parent=1 // pred_region
      %45 = vsyncadd [#allocation8], 0
      %s46 = sshll.u32 %s2, 4
      %s47 = int_to_ptr.hbm [resolvable:$true] %s46
      %s48 = sshll.u32 [#allocation9], 4
      %s49 = int_to_ptr.vmem [resolvable:$true] %s48
      %54 = dma.hbm_to_vmem [thread:$0]  %s47, 1024, %s49, [#allocation8], 128, 128, 8
    $region13: #{tpu_custom_call.1} parent=1 // pred_fallthru
      _
    // Predicated region
    $region14: #{tpu_custom_call.1} parent=1 // pred_check
      _
    $region15: #{tpu_custom_call.1} parent=1 // pred_check_branch
      %56 = sbr.rel (0) target = $region17
    $region16: #{tpu_custom_call.1} parent=1 // pred_region
      %58 = vsyncadd [#allocation11], 0
      %s59 = sshll.u32 %s3, 4
      %s60 = int_to_ptr.hbm [resolvable:$true] %s59
      %s61 = sshll.u32 [#allocation10], 4
      %s62 = int_to_ptr.vmem [resolvable:$true] %s61
      %67 = dma.hbm_to_vmem [thread:$0]  %s60, 256, %s62, [#allocation11], 32, 32, 2
    $region17: #{tpu_custom_call.1} parent=1 // pred_fallthru
      _
    // Predicated region
    $region18: #{tpu_custom_call.1} parent=1 // pred_check
      _
    $region19: #{tpu_custom_call.1} parent=1 // pred_check_branch
      %69 = sbr.rel (0) target = $region21
    $region20: #{tpu_custom_call.1} parent=1 // pred_region
      %71 = dma.done [#allocation5], 1024
    $region21: #{tpu_custom_call.1} parent=1 // pred_fallthru
      _
    // Predicated region
    $region22: #{tpu_custom_call.1} parent=1 // pred_check
      _
    $region23: #{tpu_custom_call.1} parent=1 // pred_check_branch
      %73 = sbr.rel (0) target = $region25
    $region24: #{tpu_custom_call.1} parent=1 // pred_region
      %75 = dma.done [#allocation8], 1024
    $region25: #{tpu_custom_call.1} parent=1 // pred_fallthru
      _
    // Predicated region
    $region26: #{tpu_custom_call.1} parent=1 // pred_check
      _
    $region27: #{tpu_custom_call.1} parent=1 // pred_check_branch
      %77 = sbr.rel (0) target = $region29
    $region28: #{tpu_custom_call.1} parent=1 // pred_region
      %79 = dma.done [#allocation8], 1024
    $region29: #{tpu_custom_call.1} parent=1 // pred_fallthru
      _
    // Predicated region
    $region30: #{tpu_custom_call.1} parent=1 // pred_check
      _
    $region31: #{tpu_custom_call.1} parent=1 // pred_check_branch
      %81 = sbr.rel (0) target = $region33
    $region32: #{tpu_custom_call.1} parent=1 // pred_region
      %83 = dma.done [#allocation11], 256
    $region33: #{tpu_custom_call.1} parent=1 // pred_fallthru
      _
    %p87 = scmp.eq.s32.totalorder 0, 0
    // Predicated region
    $region34: #{tpu_custom_call.1} parent=1 // pred_check
      %p88 = pneg %p87
    $region35: #{tpu_custom_call.1} parent=1 // pred_check_branch
      %90 = sbr.rel (%p88) target = $region37
    $region36: #{tpu_custom_call.1} parent=1 // pred_region
      %v91 = vld [vmem:[#allocation7] sm:$0xff]
      %v92 = vld [vmem:[#allocation7 + $0x8] sm:$0xff]
      %v93 = vld [vmem:[#allocation7 + $0x10] sm:$0xff]
      %v94 = vld [vmem:[#allocation7 + $0x18] sm:$0xff]
      %v95 = vld [vmem:[#allocation7 + $0x20] sm:$0xff]
      %v96 = vld [vmem:[#allocation7 + $0x28] sm:$0xff]
      %v97 = vld [vmem:[#allocation7 + $0x30] sm:$0xff]
      %v98 = vld [vmem:[#allocation7 + $0x38] sm:$0xff]
      %v99 = vpack.c.bf16 %v91, %v91
      %v100 = vpack.c.bf16 %v92, %v92
      %v101 = vpack.c.bf16 %v93, %v93
      %v102 = vpack.c.bf16 %v94, %v94
      %v103 = vpack.c.bf16 %v95, %v95
      %v104 = vpack.c.bf16 %v96, %v96
      %v105 = vpack.c.bf16 %v97, %v97
      %v106 = vpack.c.bf16 %v98, %v98
      %vm107 = vcmask 257024
      %108 = vst.msk [vmem:[#allocation2] sm:$0xf] %vm107, %v99
      %109 = vst.msk [vmem:[#allocation2 + $0x4] sm:$0xf] %vm107, %v100
      %110 = vst.msk [vmem:[#allocation2 + $0x8] sm:$0xf] %vm107, %v101
      %111 = vst.msk [vmem:[#allocation2 + $0xc] sm:$0xf] %vm107, %v102
      %112 = vst.msk [vmem:[#allocation2 + $0x10] sm:$0xf] %vm107, %v103
      %113 = vst.msk [vmem:[#allocation2 + $0x14] sm:$0xf] %vm107, %v104
      %114 = vst.msk [vmem:[#allocation2 + $0x18] sm:$0xf] %vm107, %v105
      %115 = vst.msk [vmem:[#allocation2 + $0x1c] sm:$0xf] %vm107, %v106
      %v116 = vld [vmem:[#allocation9] sm:$0xff]
      %v117 = vld [vmem:[#allocation9 + $0x8] sm:$0xff]
      %v118 = vld [vmem:[#allocation9 + $0x10] sm:$0xff]
      %v119 = vld [vmem:[#allocation9 + $0x18] sm:$0xff]
      %v120 = vld [vmem:[#allocation9 + $0x20] sm:$0xff]
      %v121 = vld [vmem:[#allocation9 + $0x28] sm:$0xff]
      %v122 = vld [vmem:[#allocation9 + $0x30] sm:$0xff]
      %v123 = vld [vmem:[#allocation9 + $0x38] sm:$0xff]
      %v124 = vpack.c.bf16 %v116, %v116
      %v125 = vpack.c.bf16 %v117, %v117
      %v126 = vpack.c.bf16 %v118, %v118
      %v127 = vpack.c.bf16 %v119, %v119
      %v128 = vpack.c.bf16 %v120, %v120
      %v129 = vpack.c.bf16 %v121, %v121
      %v130 = vpack.c.bf16 %v122, %v122
      %v131 = vpack.c.bf16 %v123, %v123
      %132 = vst.msk [vmem:[#allocation3] sm:$0xf] %vm107, %v124
      %133 = vst.msk [vmem:[#allocation3 + $0x4] sm:$0xf] %vm107, %v125
      %134 = vst.msk [vmem:[#allocation3 + $0x8] sm:$0xf] %vm107, %v126
      %135 = vst.msk [vmem:[#allocation3 + $0xc] sm:$0xf] %vm107, %v127
      %136 = vst.msk [vmem:[#allocation3 + $0x10] sm:$0xf] %vm107, %v128
      %137 = vst.msk [vmem:[#allocation3 + $0x14] sm:$0xf] %vm107, %v129
      %138 = vst.msk [vmem:[#allocation3 + $0x18] sm:$0xf] %vm107, %v130
      %139 = vst.msk [vmem:[#allocation3 + $0x1c] sm:$0xf] %vm107, %v131
    $region37: #{tpu_custom_call.1} parent=1 // pred_fallthru
      _
    %v140 = vld [vmem:[#allocation4] sm:$0xff]
    %v141 = vld [vmem:[#allocation4 + $0x8] sm:$0xff]
    %v142 = vld [vmem:[#allocation4 + $0x10] sm:$0xff]
    %v143 = vld [vmem:[#allocation4 + $0x18] sm:$0xff]
    %v144 = vld [vmem:[#allocation4 + $0x20] sm:$0xff]
    %v145 = vld [vmem:[#allocation4 + $0x28] sm:$0xff]
    %v146 = vld [vmem:[#allocation4 + $0x30] sm:$0xff]
    %v147 = vld [vmem:[#allocation4 + $0x38] sm:$0xff]
    %v148 = vmul.f32 %v140, 0.17677669
    %v149 = vmul.f32 %v141, 0.17677669
    %v150 = vmul.f32 %v142, 0.17677669
    %v151 = vmul.f32 %v143, 0.17677669
    %v152 = vmul.f32 %v144, 0.17677669
    %v153 = vmul.f32 %v145, 0.17677669
    %v154 = vmul.f32 %v146, 0.17677669
    %v155 = vmul.f32 %v147, 0.17677669
    %v156 = vpack.c.bf16 %v148, %v148
    %v157 = vpack.c.bf16 %v149, %v149
    %v158 = vpack.c.bf16 %v150, %v150
    %v159 = vpack.c.bf16 %v151, %v151
    %v160 = vpack.c.bf16 %v152, %v152
    %v161 = vpack.c.bf16 %v153, %v153
    %v162 = vpack.c.bf16 %v154, %v154
    %v163 = vpack.c.bf16 %v155, %v155
    %v164 = vld [vmem:[#allocation10] sm:$0x3]
    %v165 = vld [vmem:[#allocation10 + $0x2] sm:$0x3]
    %v166 = vld [vmem:[#allocation10 + $0x4] sm:$0x3]
    %v167 = vld [vmem:[#allocation10 + $0x6] sm:$0x3]
    %v168 = vld [vmem:[#allocation10 + $0x8] sm:$0x3]
    %v169 = vld [vmem:[#allocation10 + $0xa] sm:$0x3]
    %v170 = vld [vmem:[#allocation10 + $0xc] sm:$0x3]
    %v171 = vld [vmem:[#allocation10 + $0xe] sm:$0x3]
    %v172 = vld [vmem:[#allocation2] sm:$0xf]
    %v173 = vld [vmem:[#allocation2 + $0x4] sm:$0xf]
    %v174 = vld [vmem:[#allocation2 + $0x8] sm:$0xf]
    %v175 = vld [vmem:[#allocation2 + $0xc] sm:$0xf]
    %v176 = vld [vmem:[#allocation2 + $0x10] sm:$0xf]
    %v177 = vld [vmem:[#allocation2 + $0x14] sm:$0xf]
    %v178 = vld [vmem:[#allocation2 + $0x18] sm:$0xf]
    %v179 = vld [vmem:[#allocation2 + $0x1c] sm:$0xf]
    %vm180 = vcmask 261120
    %v182 = vsel %vm180, %v156, 0
    %v185 = vsel %vm180, %v172, 0
    %187 = vmatpush.bf16.xpose.msra.mxu0 0
    %188 = vmatpush.bf16.xpose.msra.mxu0 0
    %189 = vmatpush.bf16.xpose.msra.mxu0 0
    %190 = vmatpush.bf16.xpose.msra.mxu0 0
    %191 = vmatpush.bf16.xpose.msra.mxu0 0
    %192 = vmatpush.bf16.xpose.msra.mxu0 0
    %193 = vmatpush.bf16.xpose.msra.mxu0 0
    %194 = vmatpush.bf16.xpose.msra.mxu0 %v185
    %195 = vmatmul.bf16.gmra.mxu0 %v182
    %v196 = vpop.f32.mrf.mxu0
    %v197 = vadd.f32 0.0, %v196
    %v198 = vpop.f32.mrf.mxu0
    %199 = vdwg.mxu0
    %v201 = vsel %vm180, %v157, 0
    %v204 = vsel %vm180, %v173, 0
    %206 = vmatpush.bf16.xpose.msra.mxu0 0
    %207 = vmatpush.bf16.xpose.msra.mxu0 0
    %208 = vmatpush.bf16.xpose.msra.mxu0 0
    %209 = vmatpush.bf16.xpose.msra.mxu0 0
    %210 = vmatpush.bf16.xpose.msra.mxu0 0
    %211 = vmatpush.bf16.xpose.msra.mxu0 0
    %212 = vmatpush.bf16.xpose.msra.mxu0 0
    %213 = vmatpush.bf16.xpose.msra.mxu0 %v204
    %214 = vmatmul.bf16.gmra.mxu0 %v201
    %v215 = vpop.f32.mrf.mxu0
    %v216 = vadd.f32 0.0, %v215
    %v217 = vpop.f32.mrf.mxu0
    %218 = vdwg.mxu0
    %v220 = vsel %vm180, %v158, 0
    %v223 = vsel %vm180, %v174, 0
    %225 = vmatpush.bf16.xpose.msra.mxu0 0
    %226 = vmatpush.bf16.xpose.msra.mxu0 0
    %227 = vmatpush.bf16.xpose.msra.mxu0 0
    %228 = vmatpush.bf16.xpose.msra.mxu0 0
    %229 = vmatpush.bf16.xpose.msra.mxu0 0
    %230 = vmatpush.bf16.xpose.msra.mxu0 0
    %231 = vmatpush.bf16.xpose.msra.mxu0 0
    %232 = vmatpush.bf16.xpose.msra.mxu0 %v223
    %233 = vmatmul.bf16.gmra.mxu0 %v220
    %v234 = vpop.f32.mrf.mxu0
    %v235 = vadd.f32 0.0, %v234
    %v236 = vpop.f32.mrf.mxu0
    %237 = vdwg.mxu0
    %v239 = vsel %vm180, %v159, 0
    %v242 = vsel %vm180, %v175, 0
    %244 = vmatpush.bf16.xpose.msra.mxu0 0
    %245 = vmatpush.bf16.xpose.msra.mxu0 0
    %246 = vmatpush.bf16.xpose.msra.mxu0 0
    %247 = vmatpush.bf16.xpose.msra.mxu0 0
    %248 = vmatpush.bf16.xpose.msra.mxu0 0
    %249 = vmatpush.bf16.xpose.msra.mxu0 0
    %250 = vmatpush.bf16.xpose.msra.mxu0 0
    %251 = vmatpush.bf16.xpose.msra.mxu0 %v242
    %252 = vmatmul.bf16.gmra.mxu0 %v239
    %v253 = vpop.f32.mrf.mxu0
    %v254 = vadd.f32 0.0, %v253
    %v255 = vpop.f32.mrf.mxu0
    %256 = vdwg.mxu0
    %v258 = vsel %vm180, %v160, 0
    %v261 = vsel %vm180, %v176, 0
    %263 = vmatpush.bf16.xpose.msra.mxu0 0
    %264 = vmatpush.bf16.xpose.msra.mxu0 0
    %265 = vmatpush.bf16.xpose.msra.mxu0 0
    %266 = vmatpush.bf16.xpose.msra.mxu0 0
    %267 = vmatpush.bf16.xpose.msra.mxu0 0
    %268 = vmatpush.bf16.xpose.msra.mxu0 0
    %269 = vmatpush.bf16.xpose.msra.mxu0 0
    %270 = vmatpush.bf16.xpose.msra.mxu0 %v261
    %271 = vmatmul.bf16.gmra.mxu0 %v258
    %v272 = vpop.f32.mrf.mxu0
    %v273 = vadd.f32 0.0, %v272
    %v274 = vpop.f32.mrf.mxu0
    %275 = vdwg.mxu0
    %v277 = vsel %vm180, %v161, 0
    %v280 = vsel %vm180, %v177, 0
    %282 = vmatpush.bf16.xpose.msra.mxu0 0
    %283 = vmatpush.bf16.xpose.msra.mxu0 0
    %284 = vmatpush.bf16.xpose.msra.mxu0 0
    %285 = vmatpush.bf16.xpose.msra.mxu0 0
    %286 = vmatpush.bf16.xpose.msra.mxu0 0
    %287 = vmatpush.bf16.xpose.msra.mxu0 0
    %288 = vmatpush.bf16.xpose.msra.mxu0 0
    %289 = vmatpush.bf16.xpose.msra.mxu0 %v280
    %290 = vmatmul.bf16.gmra.mxu0 %v277
    %v291 = vpop.f32.mrf.mxu0
    %v292 = vadd.f32 0.0, %v291
    %v293 = vpop.f32.mrf.mxu0
    %294 = vdwg.mxu0
    %v296 = vsel %vm180, %v162, 0
    %v299 = vsel %vm180, %v178, 0
    %301 = vmatpush.bf16.xpose.msra.mxu0 0
    %302 = vmatpush.bf16.xpose.msra.mxu0 0
    %303 = vmatpush.bf16.xpose.msra.mxu0 0
    %304 = vmatpush.bf16.xpose.msra.mxu0 0
    %305 = vmatpush.bf16.xpose.msra.mxu0 0
    %306 = vmatpush.bf16.xpose.msra.mxu0 0
    %307 = vmatpush.bf16.xpose.msra.mxu0 0
    %308 = vmatpush.bf16.xpose.msra.mxu0 %v299
    %309 = vmatmul.bf16.gmra.mxu0 %v296
    %v310 = vpop.f32.mrf.mxu0
    %v311 = vadd.f32 0.0, %v310
    %v312 = vpop.f32.mrf.mxu0
    %313 = vdwg.mxu0
    %v315 = vsel %vm180, %v163, 0
    %v318 = vsel %vm180, %v179, 0
    %320 = vmatpush.bf16.xpose.msra.mxu0 0
    %321 = vmatpush.bf16.xpose.msra.mxu0 0
    %322 = vmatpush.bf16.xpose.msra.mxu0 0
    %323 = vmatpush.bf16.xpose.msra.mxu0 0
    %324 = vmatpush.bf16.xpose.msra.mxu0 0
    %325 = vmatpush.bf16.xpose.msra.mxu0 0
    %326 = vmatpush.bf16.xpose.msra.mxu0 0
    %327 = vmatpush.bf16.xpose.msra.mxu0 %v318
    %328 = vmatmul.bf16.gmra.mxu0 %v315
    %v329 = vpop.f32.mrf.mxu0
    %v330 = vadd.f32 0.0, %v329
    %v331 = vpop.f32.mrf.mxu0
    %332 = vdwg.mxu0
    %vm333 = vnez %v164
    %vm334 = vnez %v165
    %vm335 = vnez %v166
    %vm336 = vnez %v167
    %vm337 = vnez %v168
    %vm338 = vnez %v169
    %vm339 = vnez %v170
    %vm340 = vnez %v171
    %v341 = vsel %vm333, 16843009, 0
    %v342 = vsel %vm334, 16843009, 0
    %v343 = vsel %vm335, 16843009, 0
    %v344 = vsel %vm336, 16843009, 0
    %v345 = vsel %vm337, 16843009, 0
    %v346 = vsel %vm338, 16843009, 0
    %v347 = vsel %vm339, 16843009, 0
    %v348 = vsel %vm340, 16843009, 0
    %v349 = vunpack.c.0.s8 %v341
    %v350 = vunpack.c.0.s8 %v342
    %v351 = vunpack.c.0.s8 %v343
    %v352 = vunpack.c.0.s8 %v344
    %v353 = vunpack.c.0.s8 %v345
    %v354 = vunpack.c.0.s8 %v346
    %v355 = vunpack.c.0.s8 %v347
    %v356 = vunpack.c.0.s8 %v348
    %vm357 = vcmp.ne.s32.totalorder %v349, 0
    %vm358 = vcmp.ne.s32.totalorder %v350, 0
    %vm359 = vcmp.ne.s32.totalorder %v351, 0
    %vm360 = vcmp.ne.s32.totalorder %v352, 0
    %vm361 = vcmp.ne.s32.totalorder %v353, 0
    %vm362 = vcmp.ne.s32.totalorder %v354, 0
    %vm363 = vcmp.ne.s32.totalorder %v355, 0
    %vm364 = vcmp.ne.s32.totalorder %v356, 0
    %v365 = vsel %vm357, -1e+09, %v197
    %v366 = vsel %vm358, -1e+09, %v216
    %v367 = vsel %vm359, -1e+09, %v235
    %v368 = vsel %vm360, -1e+09, %v254
    %v369 = vsel %vm361, -1e+09, %v273
    %v370 = vsel %vm362, -1e+09, %v292
    %v371 = vsel %vm363, -1e+09, %v311
    %v372 = vsel %vm364, -1e+09, %v330
    %vm373 = vcmask 64512
    %v374 = vsel %vm373, %v365, -inf
    %375 = vmax.xlane.f32.xlu0 %v374
    %v376 = vpop.xlane.xlu0 %375
    %v377 = vsel %vm373, %v366, -inf
    %378 = vmax.xlane.f32.xlu0 %v377
    %v379 = vpop.xlane.xlu0 %378
    %v380 = vsel %vm373, %v367, -inf
    %381 = vmax.xlane.f32.xlu0 %v380
    %v382 = vpop.xlane.xlu0 %381
    %v383 = vsel %vm373, %v368, -inf
    %384 = vmax.xlane.f32.xlu0 %v383
    %v385 = vpop.xlane.xlu0 %384
    %v386 = vsel %vm373, %v369, -inf
    %387 = vmax.xlane.f32.xlu0 %v386
    %v388 = vpop.xlane.xlu0 %387
    %v389 = vsel %vm373, %v370, -inf
    %390 = vmax.xlane.f32.xlu0 %v389
    %v391 = vpop.xlane.xlu0 %390
    %v392 = vsel %vm373, %v371, -inf
    %393 = vmax.xlane.f32.xlu0 %v392
    %v394 = vpop.xlane.xlu0 %393
    %v395 = vsel %vm373, %v372, -inf
    %396 = vmax.xlane.f32.xlu0 %v395
    %v397 = vpop.xlane.xlu0 %396
    %v398 = vsub.f32 %v365, %v376
    %v399 = vsub.f32 %v366, %v379
    %v400 = vsub.f32 %v367, %v382
    %v401 = vsub.f32 %v368, %v385
    %v402 = vsub.f32 %v369, %v388
    %v403 = vsub.f32 %v370, %v391
    %v404 = vsub.f32 %v371, %v394
    %v405 = vsub.f32 %v372, %v397
    %v406 = vmul.f32 %v398, 1.442695
    %v407 = vpow.pop %v406
    %v408 = vmul.f32 %v399, 1.442695
    %v409 = vpow.pop %v408
    %v410 = vmul.f32 %v400, 1.442695
    %v411 = vpow.pop %v410
    %v412 = vmul.f32 %v401, 1.442695
    %v413 = vpow.pop %v412
    %v414 = vmul.f32 %v402, 1.442695
    %v415 = vpow.pop %v414
    %v416 = vmul.f32 %v403, 1.442695
    %v417 = vpow.pop %v416
    %v418 = vmul.f32 %v404, 1.442695
    %v419 = vpow.pop %v418
    %v420 = vmul.f32 %v405, 1.442695
    %v421 = vpow.pop %v420
    %v422 = vsel %vm373, %v407, 0.0
    %423 = vadd.xlane.f32.xlu0 %v422
    %v424 = vpop.xlane.xlu0 %423
    %v425 = vsel %vm373, %v409, 0.0
    %426 = vadd.xlane.f32.xlu0 %v425
    %v427 = vpop.xlane.xlu0 %426
    %v428 = vsel %vm373, %v411, 0.0
    %429 = vadd.xlane.f32.xlu0 %v428
    %v430 = vpop.xlane.xlu0 %429
    %v431 = vsel %vm373, %v413, 0.0
    %432 = vadd.xlane.f32.xlu0 %v431
    %v433 = vpop.xlane.xlu0 %432
    %v434 = vsel %vm373, %v415, 0.0
    %435 = vadd.xlane.f32.xlu0 %v434
    %v436 = vpop.xlane.xlu0 %435
    %v437 = vsel %vm373, %v417, 0.0
    %438 = vadd.xlane.f32.xlu0 %v437
    %v439 = vpop.xlane.xlu0 %438
    %v440 = vsel %vm373, %v419, 0.0
    %441 = vadd.xlane.f32.xlu0 %v440
    %v442 = vpop.xlane.xlu0 %441
    %v443 = vsel %vm373, %v421, 0.0
    %444 = vadd.xlane.f32.xlu0 %v443
    %v445 = vpop.xlane.xlu0 %444
    %v446 = vrcp.pop %v424
    %v447 = vrcp.pop %v427
    %v448 = vrcp.pop %v430
    %v449 = vrcp.pop %v433
    %v450 = vrcp.pop %v436
    %v451 = vrcp.pop %v439
    %v452 = vrcp.pop %v442
    %v453 = vrcp.pop %v445
    %v454 = vmul.f32 %v407, %v446
    %v455 = vmul.f32 %v409, %v447
    %v456 = vmul.f32 %v411, %v448
    %v457 = vmul.f32 %v413, %v449
    %v458 = vmul.f32 %v415, %v450
    %v459 = vmul.f32 %v417, %v451
    %v460 = vmul.f32 %v419, %v452
    %v461 = vmul.f32 %v421, %v453
    %v462 = vpack.c.bf16 %v454, %v454
    %v463 = vpack.c.bf16 %v455, %v455
    %v464 = vpack.c.bf16 %v456, %v456
    %v465 = vpack.c.bf16 %v457, %v457
    %v466 = vpack.c.bf16 %v458, %v458
    %v467 = vpack.c.bf16 %v459, %v459
    %v468 = vpack.c.bf16 %v460, %v460
    %v469 = vpack.c.bf16 %v461, %v461
    %v470 = vld [vmem:[#allocation3] sm:$0xf]
    %v471 = vld [vmem:[#allocation3 + $0x4] sm:$0xf]
    %v472 = vld [vmem:[#allocation3 + $0x8] sm:$0xf]
    %v473 = vld [vmem:[#allocation3 + $0xc] sm:$0xf]
    %v474 = vld [vmem:[#allocation3 + $0x10] sm:$0xf]
    %v475 = vld [vmem:[#allocation3 + $0x14] sm:$0xf]
    %v476 = vld [vmem:[#allocation3 + $0x18] sm:$0xf]
    %v477 = vld [vmem:[#allocation3 + $0x1c] sm:$0xf]
    %v479 = vsel %vm373, %v462, 0
    %vm481 = vcmask 1043456
    %v483 = vsel %vm481, %v470, 0
    %485 = vmatpush.bf16.msra.mxu0 0
    %486 = vmatpush.bf16.msra.mxu0 0
    %487 = vmatpush.bf16.msra.mxu0 0
    %488 = vmatpush.bf16.msra.mxu0 0
    %489 = vmatpush.bf16.msra.mxu0 0
    %490 = vmatpush.bf16.msra.mxu0 0
    %491 = vmatpush.bf16.msra.mxu0 0
    %492 = vmatpush.bf16.msra.mxu0 %v483
    %493 = vmatmul.bf16.gmra.mxu0 %v479
    %v494 = vpop.f32.mrf.mxu0
    %v495 = vadd.f32 0.0, %v494
    %v496 = vpop.f32.mrf.mxu0
    %497 = vdwg.mxu0
    %v499 = vsel %vm373, %v463, 0
    %v502 = vsel %vm481, %v471, 0
    %504 = vmatpush.bf16.msra.mxu0 0
    %505 = vmatpush.bf16.msra.mxu0 0
    %506 = vmatpush.bf16.msra.mxu0 0
    %507 = vmatpush.bf16.msra.mxu0 0
    %508 = vmatpush.bf16.msra.mxu0 0
    %509 = vmatpush.bf16.msra.mxu0 0
    %510 = vmatpush.bf16.msra.mxu0 0
    %511 = vmatpush.bf16.msra.mxu0 %v502
    %512 = vmatmul.bf16.gmra.mxu0 %v499
    %v513 = vpop.f32.mrf.mxu0
    %v514 = vadd.f32 0.0, %v513
    %v515 = vpop.f32.mrf.mxu0
    %516 = vdwg.mxu0
    %v518 = vsel %vm373, %v464, 0
    %v521 = vsel %vm481, %v472, 0
    %523 = vmatpush.bf16.msra.mxu0 0
    %524 = vmatpush.bf16.msra.mxu0 0
    %525 = vmatpush.bf16.msra.mxu0 0
    %526 = vmatpush.bf16.msra.mxu0 0
    %527 = vmatpush.bf16.msra.mxu0 0
    %528 = vmatpush.bf16.msra.mxu0 0
    %529 = vmatpush.bf16.msra.mxu0 0
    %530 = vmatpush.bf16.msra.mxu0 %v521
    %531 = vmatmul.bf16.gmra.mxu0 %v518
    %v532 = vpop.f32.mrf.mxu0
    %v533 = vadd.f32 0.0, %v532
    %v534 = vpop.f32.mrf.mxu0
    %535 = vdwg.mxu0
    %v537 = vsel %vm373, %v465, 0
    %v540 = vsel %vm481, %v473, 0
    %542 = vmatpush.bf16.msra.mxu0 0
    %543 = vmatpush.bf16.msra.mxu0 0
    %544 = vmatpush.bf16.msra.mxu0 0
    %545 = vmatpush.bf16.msra.mxu0 0
    %546 = vmatpush.bf16.msra.mxu0 0
    %547 = vmatpush.bf16.msra.mxu0 0
    %548 = vmatpush.bf16.msra.mxu0 0
    %549 = vmatpush.bf16.msra.mxu0 %v540
    %550 = vmatmul.bf16.gmra.mxu0 %v537
    %v551 = vpop.f32.mrf.mxu0
    %v552 = vadd.f32 0.0, %v551
    %v553 = vpop.f32.mrf.mxu0
    %554 = vdwg.mxu0
    %v556 = vsel %vm373, %v466, 0
    %v559 = vsel %vm481, %v474, 0
    %561 = vmatpush.bf16.msra.mxu0 0
    %562 = vmatpush.bf16.msra.mxu0 0
    %563 = vmatpush.bf16.msra.mxu0 0
    %564 = vmatpush.bf16.msra.mxu0 0
    %565 = vmatpush.bf16.msra.mxu0 0
    %566 = vmatpush.bf16.msra.mxu0 0
    %567 = vmatpush.bf16.msra.mxu0 0
    %568 = vmatpush.bf16.msra.mxu0 %v559
    %569 = vmatmul.bf16.gmra.mxu0 %v556
    %v570 = vpop.f32.mrf.mxu0
    %v571 = vadd.f32 0.0, %v570
    %v572 = vpop.f32.mrf.mxu0
    %573 = vdwg.mxu0
    %v575 = vsel %vm373, %v467, 0
    %v578 = vsel %vm481, %v475, 0
    %580 = vmatpush.bf16.msra.mxu0 0
    %581 = vmatpush.bf16.msra.mxu0 0
    %582 = vmatpush.bf16.msra.mxu0 0
    %583 = vmatpush.bf16.msra.mxu0 0
    %584 = vmatpush.bf16.msra.mxu0 0
    %585 = vmatpush.bf16.msra.mxu0 0
    %586 = vmatpush.bf16.msra.mxu0 0
    %587 = vmatpush.bf16.msra.mxu0 %v578
    %588 = vmatmul.bf16.gmra.mxu0 %v575
    %v589 = vpop.f32.mrf.mxu0
    %v590 = vadd.f32 0.0, %v589
    %v591 = vpop.f32.mrf.mxu0
    %592 = vdwg.mxu0
    %v594 = vsel %vm373, %v468, 0
    %v597 = vsel %vm481, %v476, 0
    %599 = vmatpush.bf16.msra.mxu0 0
    %600 = vmatpush.bf16.msra.mxu0 0
    %601 = vmatpush.bf16.msra.mxu0 0
    %602 = vmatpush.bf16.msra.mxu0 0
    %603 = vmatpush.bf16.msra.mxu0 0
    %604 = vmatpush.bf16.msra.mxu0 0
    %605 = vmatpush.bf16.msra.mxu0 0
    %606 = vmatpush.bf16.msra.mxu0 %v597
    %607 = vmatmul.bf16.gmra.mxu0 %v594
    %v608 = vpop.f32.mrf.mxu0
    %v609 = vadd.f32 0.0, %v608
    %v610 = vpop.f32.mrf.mxu0
    %611 = vdwg.mxu0
    %v613 = vsel %vm373, %v469, 0
    %v616 = vsel %vm481, %v477, 0
    %618 = vmatpush.bf16.msra.mxu0 0
    %619 = vmatpush.bf16.msra.mxu0 0
    %620 = vmatpush.bf16.msra.mxu0 0
    %621 = vmatpush.bf16.msra.mxu0 0
    %622 = vmatpush.bf16.msra.mxu0 0
    %623 = vmatpush.bf16.msra.mxu0 0
    %624 = vmatpush.bf16.msra.mxu0 0
    %625 = vmatpush.bf16.msra.mxu0 %v616
    %626 = vmatmul.bf16.gmra.mxu0 %v613
    %v627 = vpop.f32.mrf.mxu0
    %v628 = vadd.f32 0.0, %v627
    %v629 = vpop.f32.mrf.mxu0
    %630 = vdwg.mxu0
    %631 = vst.msk [vmem:[#allocation12] sm:$0xff] %vm180, %v495
    %632 = vst.msk [vmem:[#allocation12 + $0x8] sm:$0xff] %vm180, %v514
    %633 = vst.msk [vmem:[#allocation12 + $0x10] sm:$0xff] %vm180, %v533
    %634 = vst.msk [vmem:[#allocation12 + $0x18] sm:$0xff] %vm180, %v552
    %635 = vst.msk [vmem:[#allocation12 + $0x20] sm:$0xff] %vm180, %v571
    %636 = vst.msk [vmem:[#allocation12 + $0x28] sm:$0xff] %vm180, %v590
    %637 = vst.msk [vmem:[#allocation12 + $0x30] sm:$0xff] %vm180, %v609
    %638 = vst.msk [vmem:[#allocation12 + $0x38] sm:$0xff] %vm180, %v628
    %639 = vst.msk [vmem:[#allocation13] sm:$0xff] %vm373, %v454
    %640 = vst.msk [vmem:[#allocation13 + $0x8] sm:$0xff] %vm373, %v455
    %641 = vst.msk [vmem:[#allocation13 + $0x10] sm:$0xff] %vm373, %v456
    %642 = vst.msk [vmem:[#allocation13 + $0x18] sm:$0xff] %vm373, %v457
    %643 = vst.msk [vmem:[#allocation13 + $0x20] sm:$0xff] %vm373, %v458
    %644 = vst.msk [vmem:[#allocation13 + $0x28] sm:$0xff] %vm373, %v459
    %645 = vst.msk [vmem:[#allocation13 + $0x30] sm:$0xff] %vm373, %v460
    %646 = vst.msk [vmem:[#allocation13 + $0x38] sm:$0xff] %vm373, %v461
    // Predicated region
    $region38: #{tpu_custom_call.1} parent=1 // pred_check
      _
    $region39: #{tpu_custom_call.1} parent=1 // pred_check_branch
      %648 = sbr.rel (0) target = $region41
    $region40: #{tpu_custom_call.1} parent=1 // pred_region
      %650 = vsyncadd [#allocation6], 0
      %s651 = sshll.u32 [#allocation12], 4
      %s652 = int_to_ptr.vmem [resolvable:$true] %s651
      %s653 = sshll.u32 %s4, 4
      %s654 = int_to_ptr.hbm [resolvable:$true] %s653
      %659 = dma.vmem_to_hbm [thread:$0]  %s652, 1024, %s654, [#allocation6], 128, 128, 8
    $region41: #{tpu_custom_call.1} parent=1 // pred_fallthru
      _
    // Predicated region
    $region42: #{tpu_custom_call.1} parent=1 // pred_check
      _
    $region43: #{tpu_custom_call.1} parent=1 // pred_check_branch
      %661 = sbr.rel (0) target = $region45
    $region44: #{tpu_custom_call.1} parent=1 // pred_region
      %663 = vsyncadd [#allocation14], 0
      %s664 = sshll.u32 [#allocation13], 4
      %s665 = int_to_ptr.vmem [resolvable:$true] %s664
      %s666 = sshll.u32 %s5, 4
      %s667 = int_to_ptr.hbm [resolvable:$true] %s666
      %672 = dma.vmem_to_hbm [thread:$0]  %s665, 1024, %s667, [#allocation14], 128, 128, 8
    $region45: #{tpu_custom_call.1} parent=1 // pred_fallthru
      _
    // Predicated region
    $region46: #{tpu_custom_call.1} parent=1 // pred_check
      _
    $region47: #{tpu_custom_call.1} parent=1 // pred_check_branch
      %674 = sbr.rel (0) target = $region49
    $region48: #{tpu_custom_call.1} parent=1 // pred_region
      %676 = dma.done [#allocation6], 1024
    $region49: #{tpu_custom_call.1} parent=1 // pred_fallthru
      _
    // Predicated region
    $region50: #{tpu_custom_call.1} parent=1 // pred_check
      _
    $region51: #{tpu_custom_call.1} parent=1 // pred_check_branch
      %678 = sbr.rel (0) target = $region53
    $region52: #{tpu_custom_call.1} parent=1 // pred_region
      %680 = dma.done [#allocation14], 1024
    $region53: #{tpu_custom_call.1} parent=1 // pred_fallthru
      _
    %681 = vsyncpa [#allocation5], 1
    %682 = vsyncpa [#allocation8], 1
    %683 = vsyncpa [#allocation11], 1
    %684 = vsyncpa [#allocation6], 1
    %685 = vsyncpa [#allocation14], 1

</llo_original>
